<compile_context>
chip_gen: v7x
topology: tpu7x:2x2x1
jax: 0.10.0
libtpu: 0.0.40
codegen_flags: <defaults>
</compile_context>

<pallas_src>
import functools

import jax
import jax.numpy as jnp
from jax.experimental import pallas as pl
from jax.experimental.pallas import tpu as pltpu


# ------------------------------- kernel bodies -------------------------------

def _epilogue(y, gb, *, is_bn, nl, slope, eps):
    """BatchNorm (training-mode batch stats, folded to per-feature affine) + activation."""
    if is_bn:
        n = y.shape[0]
        inv_n = 1.0 / n
        s1 = jnp.sum(y, axis=0, keepdims=True)             # (1, TOC)
        s2 = jnp.sum(y * y, axis=0, keepdims=True)         # (1, TOC)
        mean = s1 * inv_n
        var = jnp.maximum(s2 * inv_n - mean * mean, 0.0)    # biased batch variance
        inv_std = jax.lax.rsqrt(var + eps)
        gamma = gb[0:1, :]
        beta = gb[1:2, :]
        scale = gamma * inv_std                              # fold BN: y*scale + bias
        bias = beta - mean * scale
        y = y * scale + bias

    if nl == 'relu':
        y = jnp.maximum(y, 0.0)
    elif nl == 'leakyrelu':
        y = jnp.where(y >= 0.0, y, slope * y)
    elif nl == 'tanh':
        y = jnp.tanh(y)
    elif nl == 'sigmoid':
        y = 1.0 / (1.0 + jnp.exp(-y))    # exact sigmoid (matches torch.sigmoid)
    # nl == 'none': passthrough
    return y


def _fc_kernel_single(x_ref, w_ref, gb_ref, o_ref, *, is_bn, nl, slope, eps):
    # Whole reduction axis per step: one MXU matmul, then fused epilogue.
    y = jnp.dot(x_ref[...], w_ref[...], preferred_element_type=jnp.float32)
    y = _epilogue(y, gb_ref[...], is_bn=is_bn, nl=nl, slope=slope, eps=eps)
    o_ref[...] = y.astype(o_ref.dtype)


def _fc_kernel_ktiled(x_ref, w_ref, gb_ref, o_ref, acc_ref, *, is_bn, nl, slope, eps):
    # K (IC) reduction tiled: accumulate in f32 VMEM scratch; BN/activation only
    # on the last K step, so batch statistics are taken on the fully reduced y.
    k = pl.program_id(1)

    @pl.when(k == 0)
    def _():
        acc_ref[...] = jnp.zeros_like(acc_ref)

    acc_ref[...] += jnp.dot(x_ref[...], w_ref[...], preferred_element_type=jnp.float32)

    @pl.when(k == pl.num_programs(1) - 1)
    def _():
        y = _epilogue(acc_ref[...], gb_ref[...], is_bn=is_bn, nl=nl, slope=slope, eps=eps)
        o_ref[...] = y.astype(o_ref.dtype)


# --------------------------------- wrapper -----------------------------------

def _round_up(x, m):
    return ((x + m - 1) // m) * m


def _vmem_capacity_bytes():
    try:
        return int(pltpu.get_tpu_info().vmem_capacity_bytes)
    except Exception:
        return 64 * 1024 * 1024   # conservative default (v7x per-TC VMEM)


def prepare_fc_params(weight, gamma=None, beta=None, matmul_dtype=jnp.bfloat16):
    """One-time parameter setup (do NOT call per forward).

    weight: PyTorch-style (OC, IC). Returns (w_t, gamma, beta) with w_t of shape
    (IC, OC) cast to `matmul_dtype` (bf16 -> half HBM traffic, MXU-native).
    """
    OC, IC = weight.shape
    w_t = jnp.asarray(weight).T.astype(matmul_dtype)          # (IC, OC)
    if gamma is None:
        gamma = jnp.ones((OC,), jnp.float32)
    if beta is None:
        beta = jnp.zeros((OC,), jnp.float32)
    return w_t, jnp.asarray(gamma, jnp.float32), jnp.asarray(beta, jnp.float32)


def fc_forward(x, w_t, gamma, beta, *, is_bn, nl, slope=None, eps=1e-5,
               out_dtype=jnp.float32, allow_xla_fallback=False):
    """x: (N, IC). w_t: pre-transposed (IC, OC) (bf16). gamma/beta: (OC,) f32."""
    assert nl in ['none', 'relu', 'leakyrelu', 'tanh', 'sigmoid']
    if nl == 'leakyrelu':
        assert slope is not None and 0.0 <= slope <= 1.0
    slope_f = 0.0 if slope is None else float(slope)
    eps_f = float(eps)

    N, IC = x.shape
    IC2, OC = w_t.shape
    assert IC2 == IC

    # Optional tiny-shape escape hatch: launch + per-grid-step overhead dwarfs the
    # flops below ~1e6 MACs; a fused XLA matmul is strictly faster there.
    if allow_xla_fallback and (N * IC * OC) < (1 << 20):
        y = jnp.dot(x.astype(w_t.dtype), w_t, preferred_element_type=jnp.float32)
        gb = jnp.stack([gamma, beta])
        y = _epilogue(y, gb, is_bn=is_bn, nl=nl, slope=slope_f, eps=eps_f)
        return y.astype(out_dtype)

    # Cast x once here (not inside the kernel): halves x DMA bytes + VMEM residency.
    x = x.astype(w_t.dtype)

    x_is = jnp.dtype(x.dtype).itemsize
    w_is = jnp.dtype(w_t.dtype).itemsize
    o_is = jnp.dtype(out_dtype).itemsize

    # ---- per-chip VMEM budget -----------------------------------------------
    vmem_cap = _vmem_capacity_bytes()
    large_vmem = vmem_cap >= 96 * 1024 * 1024          # v5e/v6e (128 MiB) vs v7x (64 MiB)
    vmem_limit = min(100 * 1024 * 1024, int(vmem_cap * 0.78))   # 100 MiB / ~50 MiB
    budget = vmem_limit - 8 * 1024 * 1024                       # headroom for compiler scratch

    def tile_bytes(toc_, tic_, num_k_, w_buf_):
        b = 2 * N * tic_ * x_is            # x tile, double-buffered by the pipeline
        b += w_buf_ * tic_ * toc_ * w_is   # W tile, w_buf_-deep buffering
        b += 2 * N * toc_ * o_is           # output tile, double-buffered
        b += 2 * 2 * toc_ * 4              # packed gamma/beta tile
        if num_k_ > 1:
            b += N * toc_ * 4              # f32 accumulator scratch
        return b

    # ---- OC tile selection ----------------------------------------------------
    oc_pad128 = _round_up(OC, 128)
    toc_cap = 2048 if large_vmem else 512
    toc = min(toc_cap, oc_pad128)
    # Keep toc >= 256 (MXU width on v6e/v7x) unless OC itself is smaller.
    toc_floor = 256 if oc_pad128 >= 256 else oc_pad128
    while toc > toc_floor and tile_bytes(toc, IC, 1, 2) > budget:
        toc = max(toc_floor, toc // 2)

    # ---- K (IC) tiling: only if the whole reduction axis no longer fits -------
    tic, ic_pad, num_k = IC, IC, 1
    if tile_bytes(toc, IC, 1, 2) > budget:
        ic_pad128 = _round_up(IC, 128)
        tic = 128
        for cand in (4096, 2048, 1024, 512, 256, 128):
            if cand <= ic_pad128:
                tic = cand
                if tile_bytes(toc, tic, 2, 2) <= budget:
                    break
        ic_pad = _round_up(IC, tic)
        num_k = ic_pad // tic
        if num_k == 1:                 # padding collapsed it back to a single tile
            tic = ic_pad

    # ---- padding (lane-dense output, even grid) ------------------------------
    oc_pad = _round_up(OC, toc)
    num_oc = oc_pad // toc
    if oc_pad != OC:
        padc = oc_pad - OC
        w_t = jnp.pad(w_t, ((0, 0), (0, padc)))
        gamma = jnp.pad(gamma, (0, padc), constant_values=1.0)
        beta = jnp.pad(beta, (0, padc))
    if ic_pad != IC:
        padk = ic_pad - IC
        x = jnp.pad(x, ((0, 0), (0, padk)))
        w_t = jnp.pad(w_t, ((0, padk), (0, 0)))
    gb = jnp.stack([gamma, beta])                      # (2, oc_pad)

    # Deeper buffering on W (dominant HBM stream) only when it actually fits.
    w_spec_kwargs = {}
    if num_oc * num_k >= 4 and tile_bytes(toc, tic, num_k, 3) <= budget:
        w_spec_kwargs['pipeline_mode'] = pl.Buffered(3)

    if num_k == 1:
        kernel = functools.partial(_fc_kernel_single, is_bn=is_bn, nl=nl,
                                   slope=slope_f, eps=eps_f)
        grid = (num_oc,)
        in_specs = [
            pl.BlockSpec((N, ic_pad), lambda j: (0, 0)),           # x: constant block
            pl.BlockSpec((ic_pad, toc), lambda j: (0, j), **w_spec_kwargs),
            pl.BlockSpec((2, toc), lambda j: (0, j)),              # packed gamma/beta
        ]
        out_specs = pl.BlockSpec((N, toc), lambda j: (0, j))
        scratch_shapes = []
        dims = ("parallel",)
    else:
        kernel = functools.partial(_fc_kernel_ktiled, is_bn=is_bn, nl=nl,
                                   slope=slope_f, eps=eps_f)
        grid = (num_oc, num_k)                                     # K innermost
        in_specs = [
            pl.BlockSpec((N, tic), lambda j, k: (0, k)),
            pl.BlockSpec((tic, toc), lambda j, k: (k, j), **w_spec_kwargs),
            pl.BlockSpec((2, toc), lambda j, k: (0, j)),
        ]
        out_specs = pl.BlockSpec((N, toc), lambda j, k: (0, j))
        scratch_shapes = [pltpu.VMEM((N, toc), jnp.float32)]
        dims = ("parallel", "arbitrary")

    out = pl.pallas_call(
        kernel,
        out_shape=jax.ShapeDtypeStruct((N, oc_pad), out_dtype),
        grid=grid,
        in_specs=in_specs,
        out_specs=out_specs,
        scratch_shapes=scratch_shapes,
        compiler_params=pltpu.CompilerParams(
            dimension_semantics=dims,            # OC tiles shard across TCs (v7x)
            vmem_limit_bytes=vmem_limit,
        ),
    )(x, w_t, gb)

    return out[:, :OC] if oc_pad != OC else out


# ----------------------------------- demo ------------------------------------

if __name__ == "__main__":
    # FC(ic=32, oc=64, is_bn=True, nl='leakyrelu', slope=0.1)
    N, IC, OC = 8, 32, 64
    key = jax.random.PRNGKey(0)
    kx, kw = jax.random.split(key)

    x = jax.random.normal(kx, (N, IC), dtype=jnp.float32)
    # nn.Linear default init: U(-1/sqrt(ic), 1/sqrt(ic))
    bound = 1.0 / (IC ** 0.5)
    weight = jax.random.uniform(kw, (OC, IC), dtype=jnp.float32,
                                minval=-bound, maxval=bound)
    # BatchNorm1d default init: weight=1, bias=0
    gamma = jnp.ones((OC,), dtype=jnp.float32)
    beta = jnp.zeros((OC,), dtype=jnp.float32)

    # One-time parameter setup (transpose + bf16 cast), NOT per-forward work.
    w_t, gamma_p, beta_p = prepare_fc_params(weight, gamma, beta)

    out = fc_forward(x, w_t, gamma_p, beta_p,
                     is_bn=True, nl='leakyrelu', slope=0.1)
    jax.block_until_ready(out)
    assert out.shape == (N, OC)

    # Pure-JAX reference (same bf16 matmul + training-mode BN with biased variance).
    y_ref = jnp.dot(x.astype(jnp.bfloat16), weight.T.astype(jnp.bfloat16),
                    preferred_element_type=jnp.float32)
    m = y_ref.mean(axis=0, keepdims=True)
    v = ((y_ref - m) ** 2).mean(axis=0, keepdims=True)
    y_ref = (y_ref - m) / jnp.sqrt(v + 1e-5) * gamma + beta
    y_ref = jnp.where(y_ref >= 0, y_ref, 0.1 * y_ref)
    assert jnp.allclose(out, y_ref, atol=1e-3, rtol=1e-3), (
        float(jnp.max(jnp.abs(out - y_ref))))

    print("KERNEL_OK")
</pallas_src>

<mosaic_0001>
module attributes {stable_mosaic.version = 11 : i64} {
  func.func @_fc_kernel_single(%arg0: i32, %arg1: memref<8x32xbf16, #tpu.memory_space<vmem>>, %arg2: memref<32x128xbf16, #tpu.memory_space<vmem>>, %arg3: memref<2x128xf32, #tpu.memory_space<vmem>>, %arg4: memref<8x128xf32, #tpu.memory_space<vmem>>) attributes {dimension_semantics = [#tpu.dimension_semantics<parallel>], iteration_bounds = array<i64: 1>, scalar_prefetch = 0 : i64, scratch_operands = 0 : i64, tpu.core_type = #tpu.core_type<tc>, window_params = [{pipeline_mode = #tpu.pipeline_mode<synchronous>, transform_indices = @transform_0, window_bounds = array<i64: 8, 32>}, {transform_indices = @transform_1, window_bounds = array<i64: 32, 128>}, {transform_indices = @transform_2, window_bounds = array<i64: 2, 128>}, {transform_indices = @transform_3, window_bounds = array<i64: 8, 128>}]} {
    %c0 = arith.constant 0 : index
    %c0_0 = arith.constant 0 : index
    %0 = vector.load %arg1[%c0, %c0_0] : memref<8x32xbf16, #tpu.memory_space<vmem>>, vector<8x32xbf16>
    %c0_1 = arith.constant 0 : index
    %c0_2 = arith.constant 0 : index
    %1 = vector.load %arg2[%c0_1, %c0_2] : memref<32x128xbf16, #tpu.memory_space<vmem>>, vector<32x128xbf16>
    %cst = arith.constant dense<0.000000e+00> : vector<8x128xf32>
    %2 = tpu.matmul %0, %1, %cst {dimension_numbers = #tpu.dot_dimension_numbers<[1], [0], [0], [1], [0, 0, 1, 1], [], []>} : vector<8x32xbf16>, vector<32x128xbf16>, vector<8x128xf32> -> vector<8x128xf32>
    %c0_3 = arith.constant 0 : index
    %c0_4 = arith.constant 0 : index
    %3 = vector.load %arg3[%c0_3, %c0_4] : memref<2x128xf32, #tpu.memory_space<vmem>>, vector<2x128xf32>
    %cst_5 = arith.constant dense<0.000000e+00> : vector<128xf32>
    %4 = vector.multi_reduction <add>, %2, %cst_5 [0] : vector<8x128xf32> to vector<128xf32>
    %5 = vector.shape_cast %4 : vector<128xf32> to vector<1x128xf32>
    %6 = arith.mulf %2, %2 : vector<8x128xf32>
    %cst_6 = arith.constant dense<0.000000e+00> : vector<128xf32>
    %7 = vector.multi_reduction <add>, %6, %cst_6 [0] : vector<8x128xf32> to vector<128xf32>
    %8 = vector.shape_cast %7 : vector<128xf32> to vector<1x128xf32>
    %cst_7 = arith.constant 1.250000e-01 : f32
    %9 = vector.broadcast %cst_7 : f32 to vector<1x128xf32>
    %10 = arith.mulf %5, %9 : vector<1x128xf32>
    %cst_8 = arith.constant 1.250000e-01 : f32
    %11 = vector.broadcast %cst_8 : f32 to vector<1x128xf32>
    %12 = arith.mulf %8, %11 : vector<1x128xf32>
    %13 = arith.mulf %10, %10 : vector<1x128xf32>
    %14 = arith.subf %12, %13 : vector<1x128xf32>
    %cst_9 = arith.constant 0.000000e+00 : f32
    %15 = vector.broadcast %cst_9 : f32 to vector<1x128xf32>
    %16 = arith.maximumf %14, %15 : vector<1x128xf32>
    %cst_10 = arith.constant 9.99999974E-6 : f32
    %17 = vector.broadcast %cst_10 : f32 to vector<1x128xf32>
    %18 = arith.addf %16, %17 : vector<1x128xf32>
    %19 = math.rsqrt %18 : vector<1x128xf32>
    %20 = vector.extract_strided_slice %3 {offsets = [0, 0], sizes = [1, 128], strides = [1, 1]} : vector<2x128xf32> to vector<1x128xf32>
    %21 = vector.extract_strided_slice %3 {offsets = [1, 0], sizes = [1, 128], strides = [1, 1]} : vector<2x128xf32> to vector<1x128xf32>
    %22 = arith.mulf %20, %19 : vector<1x128xf32>
    %23 = arith.mulf %10, %22 : vector<1x128xf32>
    %24 = arith.subf %21, %23 : vector<1x128xf32>
    %25 = vector.broadcast %22 : vector<1x128xf32> to vector<8x128xf32>
    %26 = arith.mulf %2, %25 : vector<8x128xf32>
    %27 = vector.broadcast %24 : vector<1x128xf32> to vector<8x128xf32>
    %28 = arith.addf %26, %27 : vector<8x128xf32>
    %cst_11 = arith.constant 0.000000e+00 : f32
    %29 = vector.broadcast %cst_11 : f32 to vector<8x128xf32>
    %30 = arith.cmpf oge, %28, %29 : vector<8x128xf32>
    %cst_12 = arith.constant 1.000000e-01 : f32
    %31 = vector.broadcast %cst_12 : f32 to vector<8x128xf32>
    %32 = arith.mulf %31, %28 : vector<8x128xf32>
    %33 = arith.select %30, %28, %32 : vector<8x128xi1>, vector<8x128xf32>
    %c0_13 = arith.constant 0 : index
    %c0_14 = arith.constant 0 : index
    %34 = vector.load %arg4[%c0_13, %c0_14] : memref<8x128xf32, #tpu.memory_space<vmem>>, vector<8x128xf32>
    tpu.vector_store %arg4[%c0_13, %c0_14], %33 {strides = array<i32>} : memref<8x128xf32, #tpu.memory_space<vmem>>, vector<8x128xf32>,
    return
  }
  func.func @transform_0(%arg0: i32) -> (i32, i32) {
    %c0_i32 = arith.constant 0 : i32
    %c0_i32_0 = arith.constant 0 : i32
    %c0_i32_1 = arith.constant 0 : i32
    return %c0_i32, %c0_i32_0 : i32, i32
  }
  func.func @transform_1(%arg0: i32) -> (i32, i32) {
    %c0_i32 = arith.constant 0 : i32
    %c0_i32_0 = arith.constant 0 : i32
    return %c0_i32, %arg0 : i32, i32
  }
  func.func @transform_2(%arg0: i32) -> (i32, i32) {
    %c0_i32 = arith.constant 0 : i32
    %c0_i32_0 = arith.constant 0 : i32
    return %c0_i32, %arg0 : i32, i32
  }
  func.func @transform_3(%arg0: i32) -> (i32, i32) {
    %c0_i32 = arith.constant 0 : i32
    %c0_i32_0 = arith.constant 0 : i32
    return %c0_i32, %arg0 : i32, i32
  }
}

</mosaic_0001>

<llo_original>
// kernel: tpu_custom_call.1
$region0: #{tpu_custom_call.1}
  #allocation0 [shape = 'u32[]', space=smem, size = 0x4, offset = 0x4, fixed_abs, tag = 'smem constant byte address 0x4 - core index']
  #allocation1 [shape = 'u32[144,128]{1,0:T(1,128)}', space=vmem, size = 0x12000, scoped, tag = 'internal scratch']
  %s0 = inlined_call_operand.hbm [shape: bf16[8,32], index: 0, kind: input, shape index: {}]
  %s1 = inlined_call_operand.hbm [shape: bf16[32,128], index: 1, kind: input, shape index: {}]
  %s2 = inlined_call_operand.vmem [shape: f32[2,128], index: 2, kind: input, shape index: {}]
  %s3 = inlined_call_operand.hbm [shape: f32[8,128], index: 3, kind: output, shape index: {}]
  %s4 = sld [smem:[#allocation0]]
  $region30: #{tpu_custom_call.1} parent=0
    _
  %s6 = ssub.s32 1, %s4
  %s7 = scalar_select 0, %s6, %s4
  $region1: #{tpu_custom_call.1} parent=0
    #allocation2 [shape = 'u8[2048]{0}', space=vmem, size = 0x800, scoped, tag = 'input window, operand 0, single buffered']
    #allocation3 [shape = 's32[1]{0}', space=sflag, size = 0x4, scoped, tag = 'scoped memory for tpu_custom_call.1']
    #allocation4 [shape = 's32[1]{0}', space=sflag, size = 0x4, scoped, tag = 'scoped memory for tpu_custom_call.1']
    #allocation5 [shape = 'u8[8192]{0}', space=vmem, size = 0x2000, scoped, tag = 'input window, operand 1, single buffered']
    #allocation6 [shape = 's32[1]{0}', space=sflag, size = 0x4, scoped, tag = 'scoped memory for tpu_custom_call.1']
    #allocation7 [shape = 'u8[4096]{0}', space=vmem, size = 0x1000, scoped, tag = 'output window, operand 0, single buffered']
    %8 = vsyncpa [#allocation3], 0
    %9 = vsyncpa [#allocation6], 0
    %10 = vsyncpa [#allocation4], 0
    // Predicated region
    $region2: #{tpu_custom_call.1} parent=1 // pred_check
      _
    $region3: #{tpu_custom_call.1} parent=1 // pred_check_branch
      %12 = sbr.rel (0) target = $region5
    $region4: #{tpu_custom_call.1} parent=1 // pred_region
      %s14 = ssub.s32 64, 64
      %15 = vsyncadd [#allocation3], %s14
      %s17 = sshll.u32 [#allocation2], 4
      %s18 = int_to_ptr.vmem [resolvable:$true] %s17
      %20 = dma.hbm_to_vmem [thread:$0]  %s0, 64, %s18, [#allocation3]
    $region5: #{tpu_custom_call.1} parent=1 // pred_fallthru
      _
    // Predicated region
    $region6: #{tpu_custom_call.1} parent=1 // pred_check
      _
    $region7: #{tpu_custom_call.1} parent=1 // pred_check_branch
      %22 = sbr.rel (0) target = $region9
    $region8: #{tpu_custom_call.1} parent=1 // pred_region
      %s24 = ssub.s32 256, 256
      %25 = vsyncadd [#allocation6], %s24
      %s26 = sshll.u32 [#allocation5], 4
      %s27 = int_to_ptr.vmem [resolvable:$true] %s26
      %32 = dma.hbm_to_vmem [thread:$0]  %s1, 256, %s27, [#allocation6], 64, 64, 4
    $region9: #{tpu_custom_call.1} parent=1 // pred_fallthru
      _
    // Predicated region
    $region10: #{tpu_custom_call.1} parent=1 // pred_check
      _
    $region11: #{tpu_custom_call.1} parent=1 // pred_check_branch
      %34 = sbr.rel (0) target = $region13
    $region12: #{tpu_custom_call.1} parent=1 // pred_region
      _
    $region13: #{tpu_custom_call.1} parent=1 // pred_fallthru
      _
    // Predicated region
    $region14: #{tpu_custom_call.1} parent=1 // pred_check
      _
    $region15: #{tpu_custom_call.1} parent=1 // pred_check_branch
      %36 = sbr.rel (0) target = $region17
    $region16: #{tpu_custom_call.1} parent=1 // pred_region
      %37 = dma.done [#allocation3], 64
    $region17: #{tpu_custom_call.1} parent=1 // pred_fallthru
      _
    // Predicated region
    $region18: #{tpu_custom_call.1} parent=1 // pred_check
      _
    $region19: #{tpu_custom_call.1} parent=1 // pred_check_branch
      %39 = sbr.rel (0) target = $region21
    $region20: #{tpu_custom_call.1} parent=1 // pred_region
      %40 = dma.done [#allocation6], 256
    $region21: #{tpu_custom_call.1} parent=1 // pred_fallthru
      _
    %v42 = vld [vmem:[#allocation2] sm:$0xf]
    %v43 = vld [vmem:[#allocation5] sm:$0xf]
    %v44 = vld [vmem:[#allocation5 + $0x4] sm:$0xf]
    %v45 = vld [vmem:[#allocation5 + $0x8] sm:$0xf]
    %v46 = vld [vmem:[#allocation5 + $0xc] sm:$0xf]
    %v51 = vunpack.c.l.b16 %v43
    %v52 = vunpack.c.l.b16 %v44
    %v53 = vunpack.c.l.b16 %v45
    %v54 = vunpack.c.l.b16 %v46
    %v55 = vpack.c.b16 %v52, %v51
    %v56 = vpack.c.b16 %v54, %v53
    %vm59 = vcmask 261120
    %v61 = vsel %vm59, %v42, 0
    %63 = vmatprep.subr.bf16.mxu0 0
    %64 = vmatpush1.bf16.msra.mxu0 %v55
    %65 = vmatprep.subr.bf16.mxu0 0
    %66 = vmatpush1.bf16.msra.mxu0 %v56
    %67 = vmatprep.subr.bf16.mxu0 0
    %68 = vmatpush1.bf16.msra.mxu0 0
    %69 = vmatprep.subr.bf16.mxu0 0
    %70 = vmatpush1.bf16.msra.mxu0 0
    %71 = vmatprep.subr.bf16.mxu0 0
    %72 = vmatpush1.bf16.msra.mxu0 0
    %73 = vmatprep.subr.bf16.mxu0 0
    %74 = vmatpush1.bf16.msra.mxu0 0
    %75 = vmatprep.subr.bf16.mxu0 0
    %76 = vmatpush1.bf16.msra.mxu0 0
    %77 = vmatprep.subr.bf16.mxu0 0
    %78 = vmatpush1.bf16.msra.mxu0 0
    %79 = vmatprep.subr.bf16.mxu0 0
    %80 = vmatpush1.bf16.msra.mxu0 0
    %81 = vmatprep.subr.bf16.mxu0 0
    %82 = vmatpush1.bf16.msra.mxu0 0
    %83 = vmatprep.subr.bf16.mxu0 0
    %84 = vmatpush1.bf16.msra.mxu0 0
    %85 = vmatprep.subr.bf16.mxu0 0
    %86 = vmatpush1.bf16.msra.mxu0 0
    %87 = vmatprep.subr.bf16.mxu0 0
    %88 = vmatpush1.bf16.msra.mxu0 0
    %89 = vmatprep.subr.bf16.mxu0 0
    %90 = vmatpush1.bf16.msra.mxu0 0
    %91 = vmatprep.subr.bf16.mxu0 0
    %92 = vmatpush1.bf16.msra.mxu0 0
    %93 = vmatprep.subr.bf16.mxu0 0
    %94 = vmatpush1.bf16.msra.mxu0 0
    %95 = vmatprep.mubr.bf16.mxu0 0
    %96 = vmatmul.mubr.bf16.gmra.mrb[0].mxu0 %v61
    %v97 = vpop.f32.mrb[0].mxu0
    %v98 = vadd.f32 0.0, %v97
    %v99 = vpop.f32.mrb[0].mxu0
    %v100 = vpop.f32.mrb[0].mxu0
    %v101 = vpop.f32.mrb[0].mxu0
    %102 = vdwg.mxu0
    %v103 = vld [vmem:[%s2] sm:$0x3]
    %v104 = vrot.slane %v98, 4
    %v105 = vadd.f32 %v98, %v104
    %v106 = vrot.slane %v105, 2
    %v107 = vadd.f32 %v105, %v106
    %v108 = vrot.slane %v107, 1
    %v109 = vadd.f32 %v107, %v108
    %v110 = vmul.f32 %v98, %v98
    %v111 = vrot.slane %v110, 4
    %v112 = vadd.f32 %v110, %v111
    %v113 = vrot.slane %v112, 2
    %v114 = vadd.f32 %v112, %v113
    %v115 = vrot.slane %v114, 1
    %v116 = vadd.f32 %v114, %v115
    %v117 = vmul.f32 %v109, 0.125
    %v118 = vmul.f32 %v116, 0.125
    %v119 = vmul.f32 %v117, %v117
    %v120 = vsub.f32 %v118, %v119
    %v121 = vmax.f32 %v120, 0.0
    %v122 = vadd.f32 %v121, 1e-05
    %v123 = vrsqrt.pop %v122
    %v124 = vmul.f32 %v103, %v123
    %v125 = vmul.f32 %v117, %v124
    %v127 = vrot.slane %v125, 7
    %v129 = vsub.f32 %v103, %v127
    %v130 = vlaneseq
    %v131 = vshrl.u32 %v130, 7
    %v132 = vsub.s32 0, %v131
    %v133 = vrot.slane %v124, %v132
    %v134 = vmul.f32 %v98, %v133
    %v135 = vlaneseq
    %v136 = vshrl.u32 %v135, 7
    %v137 = vsub.s32 1, %v136
    %v138 = vrot.slane %v129, %v137
    %v139 = vadd.f32 %v134, %v138
    %vm140 = vcmp.ge.f32.partialorder %v139, 0.0
    %v141 = vmul.f32 %v139, 0.1
    %v142 = vsel %vm140, %v139, %v141
    %143 = vst [vmem:[#allocation7] sm:$0xff] %v142
    // Predicated region
    $region22: #{tpu_custom_call.1} parent=1 // pred_check
      _
    $region23: #{tpu_custom_call.1} parent=1 // pred_check_branch
      %145 = sbr.rel (0) target = $region25
    $region24: #{tpu_custom_call.1} parent=1 // pred_region
      %s147 = ssub.s32 128, 128
      %148 = vsyncadd [#allocation4], %s147
      %s150 = sshll.u32 [#allocation7], 4
      %s151 = int_to_ptr.vmem [resolvable:$true] %s150
      %153 = dma.vmem_to_hbm [thread:$0]  %s151, 128, %s3, [#allocation4]
    $region25: #{tpu_custom_call.1} parent=1 // pred_fallthru
      _
    // Predicated region
    $region26: #{tpu_custom_call.1} parent=1 // pred_check
      _
    $region27: #{tpu_custom_call.1} parent=1 // pred_check_branch
      %155 = sbr.rel (0) target = $region29
    $region28: #{tpu_custom_call.1} parent=1 // pred_region
      %156 = dma.done [#allocation4], 128
    $region29: #{tpu_custom_call.1} parent=1 // pred_fallthru
      _
    %157 = vsyncpa [#allocation3], 1
    %158 = vsyncpa [#allocation6], 1
    %159 = vsyncpa [#allocation4], 1

</llo_original>
